<compile_context>
chip_gen: v5e
topology: v5e:2x2
jax: 0.10.0
libtpu: 0.0.40
codegen_flags: <defaults>
</compile_context>

<pallas_src>
import math
import functools

import numpy as np
import jax
import jax.numpy as jnp
from jax.experimental import pallas as pl
from jax.experimental.pallas import tpu as pltpu


# ------------------------------ helpers --------------------------------------

def _const_spec(shape):
    """BlockSpec for a block whose index never changes across the grid.

    Single-buffered (pl.Buffered(1)): constant blocks need no double-buffering,
    which halves their VMEM residency (matters most on v7x's 64 MiB VMEM).
    """
    return pl.BlockSpec(shape, lambda *_: (0,) * len(shape),
                        pipeline_mode=pl.Buffered(1))


def _vmem_limit_bytes():
    """Per-generation VMEM limit (~75% of physical) instead of a fixed 32 MiB."""
    try:
        cap = int(pltpu.get_tpu_info().vmem_capacity_bytes)
        return min(int(0.75 * cap), 96 * 1024 * 1024)
    except Exception:
        return 48 * 1024 * 1024   # conservative fallback, safe on v5e/v6e/v7x


# --------------------------- kernel 1: QKV projection -------------------------

def qkv_proj_kernel(x_ref,        # (Bb, tm, C)   bf16
                    w_attn_ref,   # (C, 3C)       bf16
                    b_attn_ref,   # (1, 3C)       f32
                    q_ref,        # (Bb, h, tm, hd) bf16  (pre-scaled)
                    k_ref,        # (Bb, h, tm, hd) bf16
                    v_ref,        # (Bb, h, tm, hd) bf16
                    *, n_head, scale):
    bb, tm, C = x_ref.shape
    hd = C // n_head

    x = x_ref[...].reshape(bb * tm, C)                      # bf16, big-M matmul
    qkv = jnp.dot(x, w_attn_ref[...],
                  preferred_element_type=jnp.float32) + b_attn_ref[0]  # (Bb*tm, 3C) f32

    def to_heads(t2d):        # (Bb*tm, C) -> (Bb, h, tm, hd), one planned transpose
        return jnp.transpose(t2d.reshape(bb, tm, n_head, hd), (0, 2, 1, 3))

    q_ref[...] = to_heads(qkv[:, 0 * C:1 * C] * scale).astype(q_ref.dtype)
    k_ref[...] = to_heads(qkv[:, 1 * C:2 * C]).astype(k_ref.dtype)
    v_ref[...] = to_heads(qkv[:, 2 * C:3 * C]).astype(v_ref.dtype)


# --------------- kernel 2: flash attention + fused output projection ----------

def flash_attention_kernel(q_ref,        # (1, h, tq, hd) bf16 (pre-scaled)
                           k_ref,        # (1, h, tk, hd) bf16
                           v_ref,        # (1, h, tk, hd) bf16
                           w_proj_ref,   # (C, C)  bf16
                           b_proj_ref,   # (1, C)  f32
                           o_ref,        # (1, tq, C) f32
                           m_sc,         # (h, tq, 1)  f32
                           l_sc,         # (h, tq, 1)  f32
                           acc_sc):      # (h, tq, hd) f32
    _, h, tq, hd = q_ref.shape
    tk = k_ref.shape[2]
    C = h * hd
    qi = pl.program_id(1)
    ki = pl.program_id(2)

    @pl.when(ki == 0)
    def _init():
        m_sc[...] = jnp.full(m_sc.shape, -1e30, dtype=m_sc.dtype)
        l_sc[...] = jnp.zeros(l_sc.shape, dtype=l_sc.dtype)
        acc_sc[...] = jnp.zeros(acc_sc.shape, dtype=acc_sc.dtype)

    # KV tiles strictly above the causal diagonal contribute nothing -> skip.
    @pl.when(ki * tk < (qi + 1) * tq)
    def _update():
        q = q_ref[0]                                         # (h, tq, hd) bf16
        k = k_ref[0]                                         # (h, tk, hd) bf16
        s = jnp.einsum('hqd,hkd->hqk', q, k,
                       preferred_element_type=jnp.float32)   # (h, tq, tk) f32

        # Additive causal mask with a large finite negative (only the diagonal
        # tile actually has masked entries; off-diagonal tiles get all zeros).
        row = jax.lax.broadcasted_iota(jnp.int32, (tq, tk), 0) + qi * tq
        col = jax.lax.broadcasted_iota(jnp.int32, (tq, tk), 1) + ki * tk
        s = s + jnp.where(row >= col, 0.0, -1e30).astype(jnp.float32)[None]

        m_prev = m_sc[...]
        m_new = jnp.maximum(m_prev, jnp.max(s, axis=-1, keepdims=True))
        alpha = jnp.exp(m_prev - m_new)
        p = jnp.exp(s - m_new)                               # f32
        l_sc[...] = alpha * l_sc[...] + jnp.sum(p, axis=-1, keepdims=True)
        acc_sc[...] = alpha * acc_sc[...] + jnp.einsum(
            'hqk,hkd->hqd', p.astype(jnp.bfloat16), v_ref[0],
            preferred_element_type=jnp.float32)
        m_sc[...] = m_new

    @pl.when(ki == pl.num_programs(2) - 1)
    def _finalize():
        # approx reciprocal: softmax rows sum to 1 within ~1e-3 (documented trade).
        y = acc_sc[...] * pl.reciprocal(l_sc[...], approx=True)   # (h, tq, hd) f32
        y = jnp.transpose(y, (1, 0, 2)).reshape(tq, C)            # back to (tq, C)
        out = jnp.dot(y.astype(jnp.bfloat16), w_proj_ref[...],
                      preferred_element_type=jnp.float32) + b_proj_ref[0]
        o_ref[0] = out.astype(o_ref.dtype)


# --------------------------------- wrapper ------------------------------------

def causal_self_attention(x, w_attn, b_attn, w_proj, b_proj, *, n_head,
                          q_tile=None, kv_tile=None):
    B, T, C = x.shape
    assert C % n_head == 0
    hd = C // n_head
    scale = 1.0 / math.sqrt(hd)

    # bf16 activations/weights at the pallas boundary (MXU inputs are bf16
    # anyway); biases and all accumulation stay f32.
    x = x.astype(jnp.bfloat16)
    w_attn = w_attn.astype(jnp.bfloat16)
    w_proj = w_proj.astype(jnp.bfloat16)
    b_attn = b_attn.reshape(1, 3 * C).astype(jnp.float32)
    b_proj = b_proj.reshape(1, C).astype(jnp.float32)

    vmem_limit = _vmem_limit_bytes()

    # ---- tile sizes: 256 fills the v6e/v7x 256x256 MXU; on v5e 128 + deeper
    # buffering is preferable.  Tiny demo shapes simply use T.
    def pick(t, default):
        t = min(default if t is None else t, T)
        assert T % t == 0, "T must be a multiple of the tile size"
        return t
    tq = pick(q_tile, 256)
    tk = pick(kv_tile, 256)

    # ---- projection row tiling: aim for ~256 MXU rows per step.
    tm = T if T <= 256 else 256
    assert T % tm == 0
    bb = max(1, min(B, 256 // tm))
    while B % bb:
        bb -= 1

    # -------------------- kernel 1: QKV projection -------------------------
    q, k, v = pl.pallas_call(
        functools.partial(qkv_proj_kernel, n_head=n_head, scale=scale),
        out_shape=tuple(jax.ShapeDtypeStruct((B, n_head, T, hd), jnp.bfloat16)
                        for _ in range(3)),
        grid=(B // bb, T // tm),
        in_specs=[
            pl.BlockSpec((bb, tm, C), lambda bi, ti: (bi, ti, 0)),
            _const_spec((C, 3 * C)),
            _const_spec((1, 3 * C)),
        ],
        out_specs=[pl.BlockSpec((bb, n_head, tm, hd),
                                lambda bi, ti: (bi, 0, ti, 0))] * 3,
        compiler_params=pltpu.CompilerParams(
            dimension_semantics=("parallel", "parallel"),
            vmem_limit_bytes=vmem_limit),
    )(x, w_attn, b_attn)

    # --------- kernel 2: flash attention + fused output projection ---------
    nq, nkv = T // tq, T // tk

    # Clamp kv block index to the last tile that intersects the causal region
    # for this query tile -> skipped tiles re-use the resident block (no DMA).
    def kv_index(b, qi, ki):
        return (b, 0, jnp.minimum(ki, ((qi + 1) * tq - 1) // tk), 0)

    out = pl.pallas_call(
        flash_attention_kernel,
        out_shape=jax.ShapeDtypeStruct((B, T, C), jnp.float32),
        grid=(B, nq, nkv),
        in_specs=[
            pl.BlockSpec((1, n_head, tq, hd), lambda b, qi, ki: (b, 0, qi, 0)),
            pl.BlockSpec((1, n_head, tk, hd), kv_index),
            pl.BlockSpec((1, n_head, tk, hd), kv_index),
            _const_spec((C, C)),
            _const_spec((1, C)),
        ],
        out_specs=pl.BlockSpec((1, tq, C), lambda b, qi, ki: (b, qi, 0)),
        scratch_shapes=[
            pltpu.VMEM((n_head, tq, 1), jnp.float32),    # m (running max)
            pltpu.VMEM((n_head, tq, 1), jnp.float32),    # l (running denom)
            pltpu.VMEM((n_head, tq, hd), jnp.float32),   # acc
        ],
        compiler_params=pltpu.CompilerParams(
            dimension_semantics=("parallel", "parallel", "arbitrary"),
            vmem_limit_bytes=vmem_limit),
    )(q, k, v, w_proj, b_proj)

    return out


# ------------------------- pure-JAX reference (f32) ---------------------------

def reference_attention(x, w_attn, b_attn, w_proj, b_proj, n_head):
    B, T, C = x.shape
    hd = C // n_head
    qkv = x @ w_attn + b_attn
    q, k, v = jnp.split(qkv, 3, axis=-1)
    q = q.reshape(B, T, n_head, hd).transpose(0, 2, 1, 3)
    k = k.reshape(B, T, n_head, hd).transpose(0, 2, 1, 3)
    v = v.reshape(B, T, n_head, hd).transpose(0, 2, 1, 3)
    s = (q @ k.transpose(0, 1, 3, 2)) / math.sqrt(hd)
    mask = jnp.tril(jnp.ones((T, T), bool))
    s = jnp.where(mask[None, None], s, -jnp.inf)
    p = jax.nn.softmax(s, axis=-1)
    y = (p @ v).transpose(0, 2, 1, 3).reshape(B, T, C)
    return y @ w_proj + b_proj


# ---------------------------------- main --------------------------------------

if __name__ == "__main__":
    # Small demo shapes (B, block_size, n_embed, heads).  NOTE: for real perf,
    # C (and ideally hd) should be multiples of 128 -- this config only checks
    # correctness of the kernel structure.
    B, T, C, n_head = 2, 8, 32, 4

    key = jax.random.PRNGKey(0)
    kx, k1, k2, k3, k4 = jax.random.split(key, 5)
    x = jax.random.normal(kx, (B, T, C), jnp.float32)
    w_attn = 0.02 * jax.random.normal(k1, (C, 3 * C), jnp.float32)
    b_attn = 0.02 * jax.random.normal(k2, (3 * C,), jnp.float32)
    w_proj = 0.02 * jax.random.normal(k3, (C, C), jnp.float32)
    b_proj = 0.02 * jax.random.normal(k4, (C,), jnp.float32)

    y = causal_self_attention(x, w_attn, b_attn, w_proj, b_proj, n_head=n_head)
    y = jax.block_until_ready(y)
    assert y.shape == (B, T, C)

    y_ref = reference_attention(x, w_attn, b_attn, w_proj, b_proj, n_head)
    np.testing.assert_allclose(np.asarray(y), np.asarray(y_ref),
                               atol=5e-2, rtol=5e-2)

    print("KERNEL_OK")
</pallas_src>

<mosaic_0001>
module attributes {stable_mosaic.version = 11 : i64} {
  func.func @qkv_proj_kernel(%arg0: i32, %arg1: i32, %arg2: memref<2x8x32xbf16, #tpu.memory_space<vmem>>, %arg3: memref<32x96xbf16, #tpu.memory_space<vmem>>, %arg4: memref<1x96xf32, #tpu.memory_space<vmem>>, %arg5: memref<2x4x8x8xbf16, #tpu.memory_space<vmem>>, %arg6: memref<2x4x8x8xbf16, #tpu.memory_space<vmem>>, %arg7: memref<2x4x8x8xbf16, #tpu.memory_space<vmem>>) attributes {dimension_semantics = [#tpu.dimension_semantics<parallel>, #tpu.dimension_semantics<parallel>], iteration_bounds = array<i64: 1, 1>, scalar_prefetch = 0 : i64, scratch_operands = 0 : i64, tpu.core_type = #tpu.core_type<tc>, window_params = [{transform_indices = @transform_0, window_bounds = array<i64: 2, 8, 32>}, {pipeline_mode = #tpu.pipeline_mode<synchronous>, transform_indices = @transform_1, window_bounds = array<i64: 32, 96>}, {pipeline_mode = #tpu.pipeline_mode<synchronous>, transform_indices = @transform_2, window_bounds = array<i64: 1, 96>}, {transform_indices = @transform_3, window_bounds = array<i64: 2, 4, 8, 8>}, {transform_indices = @transform_4, window_bounds = array<i64: 2, 4, 8, 8>}, {transform_indices = @transform_5, window_bounds = array<i64: 2, 4, 8, 8>}]} {
    %c0 = arith.constant 0 : index
    %c0_0 = arith.constant 0 : index
    %c0_1 = arith.constant 0 : index
    %0 = vector.load %arg2[%c0, %c0_0, %c0_1] : memref<2x8x32xbf16, #tpu.memory_space<vmem>>, vector<2x8x32xbf16>
    %1 = vector.shape_cast %0 : vector<2x8x32xbf16> to vector<16x32xbf16>
    %c0_2 = arith.constant 0 : index
    %c0_3 = arith.constant 0 : index
    %2 = vector.load %arg3[%c0_2, %c0_3] : memref<32x96xbf16, #tpu.memory_space<vmem>>, vector<32x96xbf16>
    %cst = arith.constant dense<0.000000e+00> : vector<16x96xf32>
    %3 = tpu.matmul %1, %2, %cst {dimension_numbers = #tpu.dot_dimension_numbers<[1], [0], [0], [1], [0, 0, 1, 1], [], []>} : vector<16x32xbf16>, vector<32x96xbf16>, vector<16x96xf32> -> vector<16x96xf32>
    %c0_4 = arith.constant 0 : index
    %c0_5 = arith.constant 0 : index
    %4 = vector.load %arg4[%c0_4, %c0_5] : memref<1x96xf32, #tpu.memory_space<vmem>>, vector<1x96xf32>
    %5 = vector.shape_cast %4 : vector<1x96xf32> to vector<96xf32>
    %6 = vector.shape_cast %5 : vector<96xf32> to vector<1x96xf32>
    %7 = vector.broadcast %6 : vector<1x96xf32> to vector<16x96xf32>
    %8 = arith.addf %3, %7 : vector<16x96xf32>
    %9 = vector.extract_strided_slice %8 {offsets = [0, 0], sizes = [16, 32], strides = [1, 1]} : vector<16x96xf32> to vector<16x32xf32>
    %cst_6 = arith.constant 0.353553385 : f32
    %10 = vector.broadcast %cst_6 : f32 to vector<16x32xf32>
    %11 = arith.mulf %9, %10 : vector<16x32xf32>
    %12 = vector.shape_cast %11 : vector<16x32xf32> to vector<2x8x4x8xf32>
    %13 = tpu.transpose %12, [0, 2, 1, 3] : vector<2x8x4x8xf32> -> vector<2x4x8x8xf32>
    %14 = arith.truncf %13 : vector<2x4x8x8xf32> to vector<2x4x8x8xbf16>
    %c0_7 = arith.constant 0 : index
    %c0_8 = arith.constant 0 : index
    %c0_9 = arith.constant 0 : index
    %c0_10 = arith.constant 0 : index
    %15 = vector.load %arg5[%c0_7, %c0_8, %c0_9, %c0_10] : memref<2x4x8x8xbf16, #tpu.memory_space<vmem>>, vector<2x4x8x8xbf16>
    tpu.vector_store %arg5[%c0_7, %c0_8, %c0_9, %c0_10], %14 {strides = array<i32>} : memref<2x4x8x8xbf16, #tpu.memory_space<vmem>>, vector<2x4x8x8xbf16>,
    %16 = vector.extract_strided_slice %8 {offsets = [0, 32], sizes = [16, 32], strides = [1, 1]} : vector<16x96xf32> to vector<16x32xf32>
    %17 = vector.shape_cast %16 : vector<16x32xf32> to vector<2x8x4x8xf32>
    %18 = tpu.transpose %17, [0, 2, 1, 3] : vector<2x8x4x8xf32> -> vector<2x4x8x8xf32>
    %19 = arith.truncf %18 : vector<2x4x8x8xf32> to vector<2x4x8x8xbf16>
    %c0_11 = arith.constant 0 : index
    %c0_12 = arith.constant 0 : index
    %c0_13 = arith.constant 0 : index
    %c0_14 = arith.constant 0 : index
    %20 = vector.load %arg6[%c0_11, %c0_12, %c0_13, %c0_14] : memref<2x4x8x8xbf16, #tpu.memory_space<vmem>>, vector<2x4x8x8xbf16>
    tpu.vector_store %arg6[%c0_11, %c0_12, %c0_13, %c0_14], %19 {strides = array<i32>} : memref<2x4x8x8xbf16, #tpu.memory_space<vmem>>, vector<2x4x8x8xbf16>,
    %21 = vector.extract_strided_slice %8 {offsets = [0, 64], sizes = [16, 32], strides = [1, 1]} : vector<16x96xf32> to vector<16x32xf32>
    %22 = vector.shape_cast %21 : vector<16x32xf32> to vector<2x8x4x8xf32>
    %23 = tpu.transpose %22, [0, 2, 1, 3] : vector<2x8x4x8xf32> -> vector<2x4x8x8xf32>
    %24 = arith.truncf %23 : vector<2x4x8x8xf32> to vector<2x4x8x8xbf16>
    %c0_15 = arith.constant 0 : index
    %c0_16 = arith.constant 0 : index
    %c0_17 = arith.constant 0 : index
    %c0_18 = arith.constant 0 : index
    %25 = vector.load %arg7[%c0_15, %c0_16, %c0_17, %c0_18] : memref<2x4x8x8xbf16, #tpu.memory_space<vmem>>, vector<2x4x8x8xbf16>
    tpu.vector_store %arg7[%c0_15, %c0_16, %c0_17, %c0_18], %24 {strides = array<i32>} : memref<2x4x8x8xbf16, #tpu.memory_space<vmem>>, vector<2x4x8x8xbf16>,
    return
  }
  func.func @transform_0(%arg0: i32, %arg1: i32) -> (i32, i32, i32) {
    %c0_i32 = arith.constant 0 : i32
    %c0_i32_0 = arith.constant 0 : i32
    return %arg0, %arg1, %c0_i32 : i32, i32, i32
  }
  func.func @transform_1(%arg0: i32, %arg1: i32) -> (i32, i32) {
    %c0_i32 = arith.constant 0 : i32
    %c0_i32_0 = arith.constant 0 : i32
    %c0_i32_1 = arith.constant 0 : i32
    return %c0_i32, %c0_i32_0 : i32, i32
  }
  func.func @transform_2(%arg0: i32, %arg1: i32) -> (i32, i32) {
    %c0_i32 = arith.constant 0 : i32
    %c0_i32_0 = arith.constant 0 : i32
    %c0_i32_1 = arith.constant 0 : i32
    return %c0_i32, %c0_i32_0 : i32, i32
  }
  func.func @transform_3(%arg0: i32, %arg1: i32) -> (i32, i32, i32, i32) {
    %c0_i32 = arith.constant 0 : i32
    %c0_i32_0 = arith.constant 0 : i32
    %c0_i32_1 = arith.constant 0 : i32
    return %arg0, %c0_i32, %arg1, %c0_i32_0 : i32, i32, i32, i32
  }
  func.func @transform_4(%arg0: i32, %arg1: i32) -> (i32, i32, i32, i32) {
    %c0_i32 = arith.constant 0 : i32
    %c0_i32_0 = arith.constant 0 : i32
    %c0_i32_1 = arith.constant 0 : i32
    return %arg0, %c0_i32, %arg1, %c0_i32_0 : i32, i32, i32, i32
  }
  func.func @transform_5(%arg0: i32, %arg1: i32) -> (i32, i32, i32, i32) {
    %c0_i32 = arith.constant 0 : i32
    %c0_i32_0 = arith.constant 0 : i32
    %c0_i32_1 = arith.constant 0 : i32
    return %arg0, %c0_i32, %arg1, %c0_i32_0 : i32, i32, i32, i32
  }
}

</mosaic_0001>

<llo_original>
// kernel: tpu_custom_call.1
$region0: #{tpu_custom_call.1}
  #allocation0 [shape = 'u32[]', space=smem, size = 0x4, offset = 0x4, fixed_abs, tag = 'smem constant byte address 0x4 - core index']
  #allocation1 [shape = 'u32[72,128]{1,0:T(1,128)}', space=vmem, size = 0x9000, scoped, tag = 'internal scratch']
  %s0 = inlined_call_operand.hbm [shape: bf16[2,8,32], index: 0, kind: input, shape index: {}]
  %s1 = inlined_call_operand.hbm [shape: bf16[32,96], index: 1, kind: input, shape index: {}]
  %s2 = inlined_call_operand.vmem [shape: f32[1,96], index: 2, kind: input, shape index: {}]
  %s3 = inlined_call_operand.hbm [shape: bf16[2,4,8,8], index: 3, kind: output, shape index: {0}]
  %s4 = inlined_call_operand.hbm [shape: bf16[2,4,8,8], index: 4, kind: output, shape index: {1}]
  %s5 = inlined_call_operand.hbm [shape: bf16[2,4,8,8], index: 5, kind: output, shape index: {2}]
  %6 = xla_tuple %s3, %s4, %s5
  %s7 = sld [smem:[#allocation0]]
  $region46: #{tpu_custom_call.1} parent=0
    _
  %s9 = ssub.s32 1, %s7
  %s10 = scalar_select 0, %s9, %s7
  $region1: #{tpu_custom_call.1} parent=0
    #allocation2 [shape = 'u8[4096]{0}', space=vmem, size = 0x1000, scoped, tag = 'input window, operand 0, single buffered']
    #allocation3 [shape = 's32[1]{0}', space=sflag, size = 0x4, scoped, tag = 'scoped memory for tpu_custom_call.1']
    #allocation4 [shape = 's32[1]{0}', space=sflag, size = 0x4, scoped, tag = 'scoped memory for tpu_custom_call.1']
    #allocation5 [shape = 'u8[8192]{0}', space=vmem, size = 0x2000, scoped, tag = 'input window, operand 1, single buffered']
    #allocation6 [shape = 's32[1]{0}', space=sflag, size = 0x4, scoped, tag = 'scoped memory for tpu_custom_call.1']
    #allocation7 [shape = 'u8[16384]{0}', space=vmem, size = 0x4000, scoped, tag = 'output window, operand 0, single buffered']
    #allocation8 [shape = 'u8[16384]{0}', space=vmem, size = 0x4000, scoped, tag = 'output window, operand 1, single buffered']
    #allocation9 [shape = 's32[1]{0}', space=sflag, size = 0x4, scoped, tag = 'scoped memory for tpu_custom_call.1']
    #allocation10 [shape = 'u8[16384]{0}', space=vmem, size = 0x4000, scoped, tag = 'output window, operand 2, single buffered']
    %11 = vsyncpa [#allocation3], 0
    %12 = vsyncpa [#allocation6], 0
    %13 = vsyncpa [#allocation4], 0
    %14 = vsyncpa [#allocation9], 0
    // Predicated region
    $region2: #{tpu_custom_call.1} parent=1 // pred_check
      _
    $region3: #{tpu_custom_call.1} parent=1 // pred_check_branch
      %16 = sbr.rel (0) target = $region5
    $region4: #{tpu_custom_call.1} parent=1 // pred_region
      %18 = vsyncadd [#allocation3], 0
      %s19 = sshll.u32 %s0, 4
      %s20 = int_to_ptr.hbm [resolvable:$true] %s19
      %s21 = sshll.u32 [#allocation2], 4
      %s22 = int_to_ptr.vmem [resolvable:$true] %s21
      %27 = dma.hbm_to_vmem [thread:$0]  %s20, 128, %s22, [#allocation3], 64, 64, 4
    $region5: #{tpu_custom_call.1} parent=1 // pred_fallthru
      _
    // Predicated region
    $region6: #{tpu_custom_call.1} parent=1 // pred_check
      _
    $region7: #{tpu_custom_call.1} parent=1 // pred_check_branch
      %29 = sbr.rel (0) target = $region9
    $region8: #{tpu_custom_call.1} parent=1 // pred_region
      %31 = vsyncadd [#allocation6], 0
      %s32 = sshll.u32 %s1, 4
      %s33 = int_to_ptr.hbm [resolvable:$true] %s32
      %s34 = sshll.u32 [#allocation5], 4
      %s35 = int_to_ptr.vmem [resolvable:$true] %s34
      %40 = dma.hbm_to_vmem [thread:$0]  %s33, 256, %s35, [#allocation6], 64, 64, 4
    $region9: #{tpu_custom_call.1} parent=1 // pred_fallthru
      _
    // Predicated region
    $region10: #{tpu_custom_call.1} parent=1 // pred_check
      _
    $region11: #{tpu_custom_call.1} parent=1 // pred_check_branch
      %42 = sbr.rel (0) target = $region13
    $region12: #{tpu_custom_call.1} parent=1 // pred_region
      _
    $region13: #{tpu_custom_call.1} parent=1 // pred_fallthru
      _
    // Predicated region
    $region14: #{tpu_custom_call.1} parent=1 // pred_check
      _
    $region15: #{tpu_custom_call.1} parent=1 // pred_check_branch
      %44 = sbr.rel (0) target = $region17
    $region16: #{tpu_custom_call.1} parent=1 // pred_region
      %46 = dma.done [#allocation3], 128
    $region17: #{tpu_custom_call.1} parent=1 // pred_fallthru
      _
    // Predicated region
    $region18: #{tpu_custom_call.1} parent=1 // pred_check
      _
    $region19: #{tpu_custom_call.1} parent=1 // pred_check_branch
      %48 = sbr.rel (0) target = $region21
    $region20: #{tpu_custom_call.1} parent=1 // pred_region
      %50 = dma.done [#allocation6], 256
    $region21: #{tpu_custom_call.1} parent=1 // pred_fallthru
      _
    %v52 = vld [vmem:[#allocation2] sm:$0xf]
    %v53 = vld [vmem:[#allocation2 + $0x4] sm:$0xf]
    %v54 = vld [vmem:[#allocation5] sm:$0xf]
    %v55 = vld [vmem:[#allocation5 + $0x4] sm:$0xf]
    %v56 = vld [vmem:[#allocation5 + $0x8] sm:$0xf]
    %v57 = vld [vmem:[#allocation5 + $0xc] sm:$0xf]
    %v58 = vld [vmem:[%s2] sm:$0x1]
    %v60 = vperm.slane %v58, 0
    %v64 = vunpack.c.l.b16 %v52
    %v65 = vunpack.c.l.b16 %v53
    %v66 = vpack.c.b16 %v65, %v64
    %v71 = vunpack.c.l.b16 %v54
    %v72 = vunpack.c.l.b16 %v55
    %v73 = vunpack.c.l.b16 %v56
    %v74 = vunpack.c.l.b16 %v57
    %v75 = vpack.c.b16 %v72, %v71
    %v76 = vpack.c.b16 %v74, %v73
    %vm79 = vcmask 261120
    %v81 = vsel %vm79, %v66, 0
    %83 = vmatpush.bf16.msra.mxu0 0
    %84 = vmatpush.bf16.msra.mxu0 0
    %85 = vmatpush.bf16.msra.mxu0 0
    %86 = vmatpush.bf16.msra.mxu0 0
    %87 = vmatpush.bf16.msra.mxu0 0
    %88 = vmatpush.bf16.msra.mxu0 0
    %89 = vmatpush.bf16.msra.mxu0 %v76
    %90 = vmatpush.bf16.msra.mxu0 %v75
    %91 = vmatmul.bf16.gmra.mxu0 %v81
    %v92 = vpop.f32.mrf.mxu0
    %v93 = vadd.f32 %v60, %v92
    %v94 = vpop.f32.mrf.mxu0
    %v95 = vadd.f32 %v60, %v94
    %96 = vdwg.mxu0
    %v97 = vmul.f32 %v93, 0.35355338
    %v98 = vmul.f32 %v95, 0.35355338
    %101 = vrot.lane.b32.xlu0 %v97, 120
    %v102 = vpop.permute.xlu0 %101
    %103 = vrot.lane.b32.xlu0 %v98, 120
    %v104 = vpop.permute.xlu0 %103
    %107 = vrot.lane.b32.xlu0 %v97, 112
    %v108 = vpop.permute.xlu0 %107
    %109 = vrot.lane.b32.xlu0 %v98, 112
    %v110 = vpop.permute.xlu0 %109
    %113 = vrot.lane.b32.xlu0 %v97, 104
    %v114 = vpop.permute.xlu0 %113
    %115 = vrot.lane.b32.xlu0 %v98, 104
    %v116 = vpop.permute.xlu0 %115
    %v119 = vrot.slane %v108, 4
    %vm120 = vcmask 1047556
    %v121 = vsel %vm120, %v119, %v97
    %v122 = vrot.slane %v97, 4
    %v123 = vsel %vm120, %v108, %v122
    %v125 = vunpack.c.l.s4 1983009808
    %v126 = vunpack.c.0.s8 %v125
    %v127 = vperm.slane %v121, %v126
    %v129 = vunpack.c.l.s4 1983009808
    %v130 = vunpack.c.0.s8 %v129
    %v131 = vperm.slane %v123, %v130
    %v132 = vrot.slane %v114, 4
    %v133 = vsel %vm120, %v132, %v102
    %v134 = vrot.slane %v102, 4
    %v135 = vsel %vm120, %v114, %v134
    %v137 = vunpack.c.l.s4 1983009808
    %v138 = vunpack.c.0.s8 %v137
    %v139 = vperm.slane %v133, %v138
    %v141 = vunpack.c.l.s4 1983009808
    %v142 = vunpack.c.0.s8 %v141
    %v143 = vperm.slane %v135, %v142
    %v144 = vrot.slane %v139, 4
    %v145 = vsel %vm120, %v144, %v127
    %v146 = vrot.slane %v127, 4
    %v147 = vsel %vm120, %v139, %v146
    %v149 = vunpack.c.l.s4 1934713408
    %v150 = vunpack.c.0.s8 %v149
    %v151 = vperm.slane %v145, %v150
    %v153 = vunpack.c.l.s4 1934713408
    %v154 = vunpack.c.0.s8 %v153
    %v155 = vperm.slane %v147, %v154
    %v156 = vrot.slane %v143, 4
    %v157 = vsel %vm120, %v156, %v131
    %v158 = vrot.slane %v131, 4
    %v159 = vsel %vm120, %v143, %v158
    %v161 = vunpack.c.l.s4 1934713408
    %v162 = vunpack.c.0.s8 %v161
    %v163 = vperm.slane %v157, %v162
    %v165 = vunpack.c.l.s4 1934713408
    %v166 = vunpack.c.0.s8 %v165
    %v167 = vperm.slane %v159, %v166
    %v168 = vrot.slane %v151, 4
    %v169 = vsel %vm120, 0.0, %v168
    %v170 = vrot.slane %v155, 4
    %v171 = vsel %vm120, 0.0, %v170
    %v172 = vrot.slane %v163, 4
    %v173 = vsel %vm120, 0.0, %v172
    %v174 = vrot.slane %v167, 4
    %v175 = vsel %vm120, 0.0, %v174
    %v176 = vrot.slane %v110, 4
    %v177 = vsel %vm120, %v176, %v98
    %v178 = vrot.slane %v98, 4
    %v179 = vsel %vm120, %v110, %v178
    %v181 = vunpack.c.l.s4 1983009808
    %v182 = vunpack.c.0.s8 %v181
    %v183 = vperm.slane %v177, %v182
    %v185 = vunpack.c.l.s4 1983009808
    %v186 = vunpack.c.0.s8 %v185
    %v187 = vperm.slane %v179, %v186
    %v188 = vrot.slane %v116, 4
    %v189 = vsel %vm120, %v188, %v104
    %v190 = vrot.slane %v104, 4
    %v191 = vsel %vm120, %v116, %v190
    %v193 = vunpack.c.l.s4 1983009808
    %v194 = vunpack.c.0.s8 %v193
    %v195 = vperm.slane %v189, %v194
    %v197 = vunpack.c.l.s4 1983009808
    %v198 = vunpack.c.0.s8 %v197
    %v199 = vperm.slane %v191, %v198
    %v200 = vrot.slane %v195, 4
    %v201 = vsel %vm120, %v200, %v183
    %v202 = vrot.slane %v183, 4
    %v203 = vsel %vm120, %v195, %v202
    %v205 = vunpack.c.l.s4 1934713408
    %v206 = vunpack.c.0.s8 %v205
    %v207 = vperm.slane %v201, %v206
    %v209 = vunpack.c.l.s4 1934713408
    %v210 = vunpack.c.0.s8 %v209
    %v211 = vperm.slane %v203, %v210
    %v212 = vrot.slane %v199, 4
    %v213 = vsel %vm120, %v212, %v187
    %v214 = vrot.slane %v187, 4
    %v215 = vsel %vm120, %v199, %v214
    %v217 = vunpack.c.l.s4 1934713408
    %v218 = vunpack.c.0.s8 %v217
    %v219 = vperm.slane %v213, %v218
    %v221 = vunpack.c.l.s4 1934713408
    %v222 = vunpack.c.0.s8 %v221
    %v223 = vperm.slane %v215, %v222
    %v224 = vrot.slane %v207, 4
    %v225 = vsel %vm120, 0.0, %v224
    %v226 = vrot.slane %v211, 4
    %v227 = vsel %vm120, 0.0, %v226
    %v228 = vrot.slane %v219, 4
    %v229 = vsel %vm120, 0.0, %v228
    %v230 = vrot.slane %v223, 4
    %v231 = vsel %vm120, 0.0, %v230
    %v232 = vsel %vm120, %v170, %v151
    %v234 = vunpack.c.l.s4 1983009808
    %v235 = vunpack.c.0.s8 %v234
    %v236 = vperm.slane %v232, %v235
    %v237 = vrot.slane %v171, 4
    %v238 = vsel %vm120, %v237, %v169
    %v240 = vunpack.c.l.s4 1983009808
    %v241 = vunpack.c.0.s8 %v240
    %v242 = vperm.slane %v238, %v241
    %v243 = vsel %vm120, %v174, %v163
    %v245 = vunpack.c.l.s4 1983009808
    %v246 = vunpack.c.0.s8 %v245
    %v247 = vperm.slane %v243, %v246
    %v248 = vrot.slane %v175, 4
    %v249 = vsel %vm120, %v248, %v173
    %v251 = vunpack.c.l.s4 1983009808
    %v252 = vunpack.c.0.s8 %v251
    %v253 = vperm.slane %v249, %v252
    %v254 = vrot.slane %v242, 4
    %v255 = vsel %vm120, %v254, %v236
    %v256 = vrot.slane %v236, 4
    %v257 = vsel %vm120, %v242, %v256
    %v259 = vunpack.c.l.s4 1934713408
    %v260 = vunpack.c.0.s8 %v259
    %v261 = vperm.slane %v255, %v260
    %v263 = vunpack.c.l.s4 1934713408
    %v264 = vunpack.c.0.s8 %v263
    %v265 = vperm.slane %v257, %v264
    %v266 = vrot.slane %v253, 4
    %v267 = vsel %vm120, %v266, %v247
    %v268 = vrot.slane %v247, 4
    %v269 = vsel %vm120, %v253, %v268
    %v271 = vunpack.c.l.s4 1934713408
    %v272 = vunpack.c.0.s8 %v271
    %v273 = vperm.slane %v267, %v272
    %v275 = vunpack.c.l.s4 1934713408
    %v276 = vunpack.c.0.s8 %v275
    %v277 = vperm.slane %v269, %v276
    %v278 = vrot.slane %v273, 4
    %v279 = vsel %vm120, %v278, %v261
    %v280 = vrot.slane %v261, 4
    %v281 = vsel %vm120, %v273, %v280
    %v282 = vrot.slane %v277, 4
    %v283 = vsel %vm120, %v282, %v265
    %v284 = vrot.slane %v265, 4
    %v285 = vsel %vm120, %v277, %v284
    %v286 = vsel %vm120, %v226, %v207
    %v288 = vunpack.c.l.s4 1983009808
    %v289 = vunpack.c.0.s8 %v288
    %v290 = vperm.slane %v286, %v289
    %v291 = vrot.slane %v227, 4
    %v292 = vsel %vm120, %v291, %v225
    %v294 = vunpack.c.l.s4 1983009808
    %v295 = vunpack.c.0.s8 %v294
    %v296 = vperm.slane %v292, %v295
    %v297 = vsel %vm120, %v230, %v219
    %v299 = vunpack.c.l.s4 1983009808
    %v300 = vunpack.c.0.s8 %v299
    %v301 = vperm.slane %v297, %v300
    %v302 = vrot.slane %v231, 4
    %v303 = vsel %vm120, %v302, %v229
    %v305 = vunpack.c.l.s4 1983009808
    %v306 = vunpack.c.0.s8 %v305
    %v307 = vperm.slane %v303, %v306
    %v308 = vrot.slane %v296, 4
    %v309 = vsel %vm120, %v308, %v290
    %v310 = vrot.slane %v290, 4
    %v311 = vsel %vm120, %v296, %v310
    %v313 = vunpack.c.l.s4 1934713408
    %v314 = vunpack.c.0.s8 %v313
    %v315 = vperm.slane %v309, %v314
    %v317 = vunpack.c.l.s4 1934713408
    %v318 = vunpack.c.0.s8 %v317
    %v319 = vperm.slane %v311, %v318
    %v320 = vrot.slane %v307, 4
    %v321 = vsel %vm120, %v320, %v301
    %v322 = vrot.slane %v301, 4
    %v323 = vsel %vm120, %v307, %v322
    %v325 = vunpack.c.l.s4 1934713408
    %v326 = vunpack.c.0.s8 %v325
    %v327 = vperm.slane %v321, %v326
    %v329 = vunpack.c.l.s4 1934713408
    %v330 = vunpack.c.0.s8 %v329
    %v331 = vperm.slane %v323, %v330
    %v332 = vrot.slane %v327, 4
    %v333 = vsel %vm120, %v332, %v315
    %v334 = vrot.slane %v315, 4
    %v335 = vsel %vm120, %v327, %v334
    %v336 = vrot.slane %v331, 4
    %v337 = vsel %vm120, %v336, %v319
    %v338 = vrot.slane %v319, 4
    %v339 = vsel %vm120, %v331, %v338
    %v340 = vpack.c.bf16 %v279, %v279
    %v341 = vpack.c.bf16 %v281, %v281
    %v342 = vpack.c.bf16 %v283, %v283
    %v343 = vpack.c.bf16 %v285, %v285
    %v344 = vpack.c.bf16 %v333, %v333
    %v345 = vpack.c.bf16 %v335, %v335
    %v346 = vpack.c.bf16 %v337, %v337
    %v347 = vpack.c.bf16 %v339, %v339
    %vm348 = vcmask 60416
    %349 = vst.msk [vmem:[#allocation7] sm:$0xf] %vm348, %v340
    %350 = vst.msk [vmem:[#allocation7 + $0x4] sm:$0xf] %vm348, %v341
    %351 = vst.msk [vmem:[#allocation7 + $0x8] sm:$0xf] %vm348, %v342
    %352 = vst.msk [vmem:[#allocation7 + $0xc] sm:$0xf] %vm348, %v343
    %353 = vst.msk [vmem:[#allocation7 + $0x10] sm:$0xf] %vm348, %v344
    %354 = vst.msk [vmem:[#allocation7 + $0x14] sm:$0xf] %vm348, %v345
    %355 = vst.msk [vmem:[#allocation7 + $0x18] sm:$0xf] %vm348, %v346
    %356 = vst.msk [vmem:[#allocation7 + $0x1c] sm:$0xf] %vm348, %v347
    %359 = vrot.lane.b32.xlu0 %v93, 120
    %v360 = vpop.permute.xlu0 %359
    %361 = vrot.lane.b32.xlu0 %v95, 120
    %v362 = vpop.permute.xlu0 %361
    %363 = vrot.lane.b32.xlu0 %v93, 112
    %v364 = vpop.permute.xlu0 %363
    %365 = vrot.lane.b32.xlu0 %v95, 112
    %v366 = vpop.permute.xlu0 %365
    %367 = vrot.lane.b32.xlu0 %v93, 104
    %v368 = vpop.permute.xlu0 %367
    %369 = vrot.lane.b32.xlu0 %v95, 104
    %v370 = vpop.permute.xlu0 %369
    %371 = vrot.lane.b32.xlu0 %v93, 96
    %v372 = vpop.permute.xlu0 %371
    %373 = vrot.lane.b32.xlu0 %v95, 96
    %v374 = vpop.permute.xlu0 %373
    %375 = vrot.lane.b32.xlu0 %v360, 96
    %v376 = vpop.permute.xlu0 %375
    %377 = vrot.lane.b32.xlu0 %v362, 96
    %v378 = vpop.permute.xlu0 %377
    %379 = vrot.lane.b32.xlu0 %v364, 96
    %v380 = vpop.permute.xlu0 %379
    %381 = vrot.lane.b32.xlu0 %v366, 96
    %v382 = vpop.permute.xlu0 %381
    %383 = vrot.lane.b32.xlu0 %v368, 96
    %v384 = vpop.permute.xlu0 %383
    %385 = vrot.lane.b32.xlu0 %v370, 96
    %v386 = vpop.permute.xlu0 %385
    %v395 = vrot.slane %v380, 4
    %v396 = vsel %vm120, %v395, %v372
    %v397 = vrot.slane %v372, 4
    %v398 = vsel %vm120, %v380, %v397
    %v400 = vunpack.c.l.s4 1983009808
    %v401 = vunpack.c.0.s8 %v400
    %v402 = vperm.slane %v396, %v401
    %v404 = vunpack.c.l.s4 1983009808
    %v405 = vunpack.c.0.s8 %v404
    %v406 = vperm.slane %v398, %v405
    %v407 = vrot.slane %v384, 4
    %v408 = vsel %vm120, %v407, %v376
    %v409 = vrot.slane %v376, 4
    %v410 = vsel %vm120, %v384, %v409
    %v412 = vunpack.c.l.s4 1983009808
    %v413 = vunpack.c.0.s8 %v412
    %v414 = vperm.slane %v408, %v413
    %v416 = vunpack.c.l.s4 1983009808
    %v417 = vunpack.c.0.s8 %v416
    %v418 = vperm.slane %v410, %v417
    %v419 = vrot.slane %v414, 4
    %v420 = vsel %vm120, %v419, %v402
    %v421 = vrot.slane %v402, 4
    %v422 = vsel %vm120, %v414, %v421
    %v424 = vunpack.c.l.s4 1934713408
    %v425 = vunpack.c.0.s8 %v424
    %v426 = vperm.slane %v420, %v425
    %v428 = vunpack.c.l.s4 1934713408
    %v429 = vunpack.c.0.s8 %v428
    %v430 = vperm.slane %v422, %v429
    %v431 = vrot.slane %v418, 4
    %v432 = vsel %vm120, %v431, %v406
    %v433 = vrot.slane %v406, 4
    %v434 = vsel %vm120, %v418, %v433
    %v436 = vunpack.c.l.s4 1934713408
    %v437 = vunpack.c.0.s8 %v436
    %v438 = vperm.slane %v432, %v437
    %v440 = vunpack.c.l.s4 1934713408
    %v441 = vunpack.c.0.s8 %v440
    %v442 = vperm.slane %v434, %v441
    %v443 = vrot.slane %v426, 4
    %v444 = vsel %vm120, 0.0, %v443
    %v445 = vrot.slane %v430, 4
    %v446 = vsel %vm120, 0.0, %v445
    %v447 = vrot.slane %v438, 4
    %v448 = vsel %vm120, 0.0, %v447
    %v449 = vrot.slane %v442, 4
    %v450 = vsel %vm120, 0.0, %v449
    %v451 = vrot.slane %v382, 4
    %v452 = vsel %vm120, %v451, %v374
    %v453 = vrot.slane %v374, 4
    %v454 = vsel %vm120, %v382, %v453
    %v456 = vunpack.c.l.s4 1983009808
    %v457 = vunpack.c.0.s8 %v456
    %v458 = vperm.slane %v452, %v457
    %v460 = vunpack.c.l.s4 1983009808
    %v461 = vunpack.c.0.s8 %v460
    %v462 = vperm.slane %v454, %v461
    %v463 = vrot.slane %v386, 4
    %v464 = vsel %vm120, %v463, %v378
    %v465 = vrot.slane %v378, 4
    %v466 = vsel %vm120, %v386, %v465
    %v468 = vunpack.c.l.s4 1983009808
    %v469 = vunpack.c.0.s8 %v468
    %v470 = vperm.slane %v464, %v469
    %v472 = vunpack.c.l.s4 1983009808
    %v473 = vunpack.c.0.s8 %v472
    %v474 = vperm.slane %v466, %v473
    %v475 = vrot.slane %v470, 4
    %v476 = vsel %vm120, %v475, %v458
    %v477 = vrot.slane %v458, 4
    %v478 = vsel %vm120, %v470, %v477
    %v480 = vunpack.c.l.s4 1934713408
    %v481 = vunpack.c.0.s8 %v480
    %v482 = vperm.slane %v476, %v481
    %v484 = vunpack.c.l.s4 1934713408
    %v485 = vunpack.c.0.s8 %v484
    %v486 = vperm.slane %v478, %v485
    %v487 = vrot.slane %v474, 4
    %v488 = vsel %vm120, %v487, %v462
    %v489 = vrot.slane %v462, 4
    %v490 = vsel %vm120, %v474, %v489
    %v492 = vunpack.c.l.s4 1934713408
    %v493 = vunpack.c.0.s8 %v492
    %v494 = vperm.slane %v488, %v493
    %v496 = vunpack.c.l.s4 1934713408
    %v497 = vunpack.c.0.s8 %v496
    %v498 = vperm.slane %v490, %v497
    %v499 = vrot.slane %v482, 4
    %v500 = vsel %vm120, 0.0, %v499
    %v501 = vrot.slane %v486, 4
    %v502 = vsel %vm120, 0.0, %v501
    %v503 = vrot.slane %v494, 4
    %v504 = vsel %vm120, 0.0, %v503
    %v505 = vrot.slane %v498, 4
    %v506 = vsel %vm120, 0.0, %v505
    %v507 = vsel %vm120, %v445, %v426
    %v509 = vunpack.c.l.s4 1983009808
    %v510 = vunpack.c.0.s8 %v509
    %v511 = vperm.slane %v507, %v510
    %v512 = vrot.slane %v446, 4
    %v513 = vsel %vm120, %v512, %v444
    %v515 = vunpack.c.l.s4 1983009808
    %v516 = vunpack.c.0.s8 %v515
    %v517 = vperm.slane %v513, %v516
    %v518 = vsel %vm120, %v449, %v438
    %v520 = vunpack.c.l.s4 1983009808
    %v521 = vunpack.c.0.s8 %v520
    %v522 = vperm.slane %v518, %v521
    %v523 = vrot.slane %v450, 4
    %v524 = vsel %vm120, %v523, %v448
    %v526 = vunpack.c.l.s4 1983009808
    %v527 = vunpack.c.0.s8 %v526
    %v528 = vperm.slane %v524, %v527
    %v529 = vrot.slane %v517, 4
    %v530 = vsel %vm120, %v529, %v511
    %v531 = vrot.slane %v511, 4
    %v532 = vsel %vm120, %v517, %v531
    %v534 = vunpack.c.l.s4 1934713408
    %v535 = vunpack.c.0.s8 %v534
    %v536 = vperm.slane %v530, %v535
    %v538 = vunpack.c.l.s4 1934713408
    %v539 = vunpack.c.0.s8 %v538
    %v540 = vperm.slane %v532, %v539
    %v541 = vrot.slane %v528, 4
    %v542 = vsel %vm120, %v541, %v522
    %v543 = vrot.slane %v522, 4
    %v544 = vsel %vm120, %v528, %v543
    %v546 = vunpack.c.l.s4 1934713408
    %v547 = vunpack.c.0.s8 %v546
    %v548 = vperm.slane %v542, %v547
    %v550 = vunpack.c.l.s4 1934713408
    %v551 = vunpack.c.0.s8 %v550
    %v552 = vperm.slane %v544, %v551
    %v553 = vrot.slane %v548, 4
    %v554 = vsel %vm120, %v553, %v536
    %v555 = vrot.slane %v536, 4
    %v556 = vsel %vm120, %v548, %v555
    %v557 = vrot.slane %v552, 4
    %v558 = vsel %vm120, %v557, %v540
    %v559 = vrot.slane %v540, 4
    %v560 = vsel %vm120, %v552, %v559
    %v561 = vsel %vm120, %v501, %v482
    %v563 = vunpack.c.l.s4 1983009808
    %v564 = vunpack.c.0.s8 %v563
    %v565 = vperm.slane %v561, %v564
    %v566 = vrot.slane %v502, 4
    %v567 = vsel %vm120, %v566, %v500
    %v569 = vunpack.c.l.s4 1983009808
    %v570 = vunpack.c.0.s8 %v569
    %v571 = vperm.slane %v567, %v570
    %v572 = vsel %vm120, %v505, %v494
    %v574 = vunpack.c.l.s4 1983009808
    %v575 = vunpack.c.0.s8 %v574
    %v576 = vperm.slane %v572, %v575
    %v577 = vrot.slane %v506, 4
    %v578 = vsel %vm120, %v577, %v504
    %v580 = vunpack.c.l.s4 1983009808
    %v581 = vunpack.c.0.s8 %v580
    %v582 = vperm.slane %v578, %v581
    %v583 = vrot.slane %v571, 4
    %v584 = vsel %vm120, %v583, %v565
    %v585 = vrot.slane %v565, 4
    %v586 = vsel %vm120, %v571, %v585
    %v588 = vunpack.c.l.s4 1934713408
    %v589 = vunpack.c.0.s8 %v588
    %v590 = vperm.slane %v584, %v589
    %v592 = vunpack.c.l.s4 1934713408
    %v593 = vunpack.c.0.s8 %v592
    %v594 = vperm.slane %v586, %v593
    %v595 = vrot.slane %v582, 4
    %v596 = vsel %vm120, %v595, %v576
    %v597 = vrot.slane %v576, 4
    %v598 = vsel %vm120, %v582, %v597
    %v600 = vunpack.c.l.s4 1934713408
    %v601 = vunpack.c.0.s8 %v600
    %v602 = vperm.slane %v596, %v601
    %v604 = vunpack.c.l.s4 1934713408
    %v605 = vunpack.c.0.s8 %v604
    %v606 = vperm.slane %v598, %v605
    %v607 = vrot.slane %v602, 4
    %v608 = vsel %vm120, %v607, %v590
    %v609 = vrot.slane %v590, 4
    %v610 = vsel %vm120, %v602, %v609
    %v611 = vrot.slane %v606, 4
    %v612 = vsel %vm120, %v611, %v594
    %v613 = vrot.slane %v594, 4
    %v614 = vsel %vm120, %v606, %v613
    %v615 = vpack.c.bf16 %v554, %v554
    %v616 = vpack.c.bf16 %v556, %v556
    %v617 = vpack.c.bf16 %v558, %v558
    %v618 = vpack.c.bf16 %v560, %v560
    %v619 = vpack.c.bf16 %v608, %v608
    %v620 = vpack.c.bf16 %v610, %v610
    %v621 = vpack.c.bf16 %v612, %v612
    %v622 = vpack.c.bf16 %v614, %v614
    %623 = vst.msk [vmem:[#allocation8] sm:$0xf] %vm348, %v615
    %624 = vst.msk [vmem:[#allocation8 + $0x4] sm:$0xf] %vm348, %v616
    %625 = vst.msk [vmem:[#allocation8 + $0x8] sm:$0xf] %vm348, %v617
    %626 = vst.msk [vmem:[#allocation8 + $0xc] sm:$0xf] %vm348, %v618
    %627 = vst.msk [vmem:[#allocation8 + $0x10] sm:$0xf] %vm348, %v619
    %628 = vst.msk [vmem:[#allocation8 + $0x14] sm:$0xf] %vm348, %v620
    %629 = vst.msk [vmem:[#allocation8 + $0x18] sm:$0xf] %vm348, %v621
    %630 = vst.msk [vmem:[#allocation8 + $0x1c] sm:$0xf] %vm348, %v622
    %631 = vrot.lane.b32.xlu0 %v93, 64
    %v632 = vpop.permute.xlu0 %631
    %633 = vrot.lane.b32.xlu0 %v95, 64
    %v634 = vpop.permute.xlu0 %633
    %635 = vrot.lane.b32.xlu0 %v360, 64
    %v636 = vpop.permute.xlu0 %635
    %637 = vrot.lane.b32.xlu0 %v362, 64
    %v638 = vpop.permute.xlu0 %637
    %639 = vrot.lane.b32.xlu0 %v364, 64
    %v640 = vpop.permute.xlu0 %639
    %641 = vrot.lane.b32.xlu0 %v366, 64
    %v642 = vpop.permute.xlu0 %641
    %643 = vrot.lane.b32.xlu0 %v368, 64
    %v644 = vpop.permute.xlu0 %643
    %645 = vrot.lane.b32.xlu0 %v370, 64
    %v646 = vpop.permute.xlu0 %645
    %v655 = vrot.slane %v640, 4
    %v656 = vsel %vm120, %v655, %v632
    %v657 = vrot.slane %v632, 4
    %v658 = vsel %vm120, %v640, %v657
    %v660 = vunpack.c.l.s4 1983009808
    %v661 = vunpack.c.0.s8 %v660
    %v662 = vperm.slane %v656, %v661
    %v664 = vunpack.c.l.s4 1983009808
    %v665 = vunpack.c.0.s8 %v664
    %v666 = vperm.slane %v658, %v665
    %v667 = vrot.slane %v644, 4
    %v668 = vsel %vm120, %v667, %v636
    %v669 = vrot.slane %v636, 4
    %v670 = vsel %vm120, %v644, %v669
    %v672 = vunpack.c.l.s4 1983009808
    %v673 = vunpack.c.0.s8 %v672
    %v674 = vperm.slane %v668, %v673
    %v676 = vunpack.c.l.s4 1983009808
    %v677 = vunpack.c.0.s8 %v676
    %v678 = vperm.slane %v670, %v677
    %v679 = vrot.slane %v674, 4
    %v680 = vsel %vm120, %v679, %v662
    %v681 = vrot.slane %v662, 4
    %v682 = vsel %vm120, %v674, %v681
    %v684 = vunpack.c.l.s4 1934713408
    %v685 = vunpack.c.0.s8 %v684
    %v686 = vperm.slane %v680, %v685
    %v688 = vunpack.c.l.s4 1934713408
    %v689 = vunpack.c.0.s8 %v688
    %v690 = vperm.slane %v682, %v689
    %v691 = vrot.slane %v678, 4
    %v692 = vsel %vm120, %v691, %v666
    %v693 = vrot.slane %v666, 4
    %v694 = vsel %vm120, %v678, %v693
    %v696 = vunpack.c.l.s4 1934713408
    %v697 = vunpack.c.0.s8 %v696
    %v698 = vperm.slane %v692, %v697
    %v700 = vunpack.c.l.s4 1934713408
    %v701 = vunpack.c.0.s8 %v700
    %v702 = vperm.slane %v694, %v701
    %v703 = vrot.slane %v686, 4
    %v704 = vsel %vm120, 0.0, %v703
    %v705 = vrot.slane %v690, 4
    %v706 = vsel %vm120, 0.0, %v705
    %v707 = vrot.slane %v698, 4
    %v708 = vsel %vm120, 0.0, %v707
    %v709 = vrot.slane %v702, 4
    %v710 = vsel %vm120, 0.0, %v709
    %v711 = vrot.slane %v642, 4
    %v712 = vsel %vm120, %v711, %v634
    %v713 = vrot.slane %v634, 4
    %v714 = vsel %vm120, %v642, %v713
    %v716 = vunpack.c.l.s4 1983009808
    %v717 = vunpack.c.0.s8 %v716
    %v718 = vperm.slane %v712, %v717
    %v720 = vunpack.c.l.s4 1983009808
    %v721 = vunpack.c.0.s8 %v720
    %v722 = vperm.slane %v714, %v721
    %v723 = vrot.slane %v646, 4
    %v724 = vsel %vm120, %v723, %v638
    %v725 = vrot.slane %v638, 4
    %v726 = vsel %vm120, %v646, %v725
    %v728 = vunpack.c.l.s4 1983009808
    %v729 = vunpack.c.0.s8 %v728
    %v730 = vperm.slane %v724, %v729
    %v732 = vunpack.c.l.s4 1983009808
    %v733 = vunpack.c.0.s8 %v732
    %v734 = vperm.slane %v726, %v733
    %v735 = vrot.slane %v730, 4
    %v736 = vsel %vm120, %v735, %v718
    %v737 = vrot.slane %v718, 4
    %v738 = vsel %vm120, %v730, %v737
    %v740 = vunpack.c.l.s4 1934713408
    %v741 = vunpack.c.0.s8 %v740
    %v742 = vperm.slane %v736, %v741
    %v744 = vunpack.c.l.s4 1934713408
    %v745 = vunpack.c.0.s8 %v744
    %v746 = vperm.slane %v738, %v745
    %v747 = vrot.slane %v734, 4
    %v748 = vsel %vm120, %v747, %v722
    %v749 = vrot.slane %v722, 4
    %v750 = vsel %vm120, %v734, %v749
    %v752 = vunpack.c.l.s4 1934713408
    %v753 = vunpack.c.0.s8 %v752
    %v754 = vperm.slane %v748, %v753
    %v756 = vunpack.c.l.s4 1934713408
    %v757 = vunpack.c.0.s8 %v756
    %v758 = vperm.slane %v750, %v757
    %v759 = vrot.slane %v742, 4
    %v760 = vsel %vm120, 0.0, %v759
    %v761 = vrot.slane %v746, 4
    %v762 = vsel %vm120, 0.0, %v761
    %v763 = vrot.slane %v754, 4
    %v764 = vsel %vm120, 0.0, %v763
    %v765 = vrot.slane %v758, 4
    %v766 = vsel %vm120, 0.0, %v765
    %v767 = vsel %vm120, %v705, %v686
    %v769 = vunpack.c.l.s4 1983009808
    %v770 = vunpack.c.0.s8 %v769
    %v771 = vperm.slane %v767, %v770
    %v772 = vrot.slane %v706, 4
    %v773 = vsel %vm120, %v772, %v704
    %v775 = vunpack.c.l.s4 1983009808
    %v776 = vunpack.c.0.s8 %v775
    %v777 = vperm.slane %v773, %v776
    %v778 = vsel %vm120, %v709, %v698
    %v780 = vunpack.c.l.s4 1983009808
    %v781 = vunpack.c.0.s8 %v780
    %v782 = vperm.slane %v778, %v781
    %v783 = vrot.slane %v710, 4
    %v784 = vsel %vm120, %v783, %v708
    %v786 = vunpack.c.l.s4 1983009808
    %v787 = vunpack.c.0.s8 %v786
    %v788 = vperm.slane %v784, %v787
    %v789 = vrot.slane %v777, 4
    %v790 = vsel %vm120, %v789, %v771
    %v791 = vrot.slane %v771, 4
    %v792 = vsel %vm120, %v777, %v791
    %v794 = vunpack.c.l.s4 1934713408
    %v795 = vunpack.c.0.s8 %v794
    %v796 = vperm.slane %v790, %v795
    %v798 = vunpack.c.l.s4 1934713408
    %v799 = vunpack.c.0.s8 %v798
    %v800 = vperm.slane %v792, %v799
    %v801 = vrot.slane %v788, 4
    %v802 = vsel %vm120, %v801, %v782
    %v803 = vrot.slane %v782, 4
    %v804 = vsel %vm120, %v788, %v803
    %v806 = vunpack.c.l.s4 1934713408
    %v807 = vunpack.c.0.s8 %v806
    %v808 = vperm.slane %v802, %v807
    %v810 = vunpack.c.l.s4 1934713408
    %v811 = vunpack.c.0.s8 %v810
    %v812 = vperm.slane %v804, %v811
    %v813 = vrot.slane %v808, 4
    %v814 = vsel %vm120, %v813, %v796
    %v815 = vrot.slane %v796, 4
    %v816 = vsel %vm120, %v808, %v815
    %v817 = vrot.slane %v812, 4
    %v818 = vsel %vm120, %v817, %v800
    %v819 = vrot.slane %v800, 4
    %v820 = vsel %vm120, %v812, %v819
    %v821 = vsel %vm120, %v761, %v742
    %v823 = vunpack.c.l.s4 1983009808
    %v824 = vunpack.c.0.s8 %v823
    %v825 = vperm.slane %v821, %v824
    %v826 = vrot.slane %v762, 4
    %v827 = vsel %vm120, %v826, %v760
    %v829 = vunpack.c.l.s4 1983009808
    %v830 = vunpack.c.0.s8 %v829
    %v831 = vperm.slane %v827, %v830
    %v832 = vsel %vm120, %v765, %v754
    %v834 = vunpack.c.l.s4 1983009808
    %v835 = vunpack.c.0.s8 %v834
    %v836 = vperm.slane %v832, %v835
    %v837 = vrot.slane %v766, 4
    %v838 = vsel %vm120, %v837, %v764
    %v840 = vunpack.c.l.s4 1983009808
    %v841 = vunpack.c.0.s8 %v840
    %v842 = vperm.slane %v838, %v841
    %v843 = vrot.slane %v831, 4
    %v844 = vsel %vm120, %v843, %v825
    %v845 = vrot.slane %v825, 4
    %v846 = vsel %vm120, %v831, %v845
    %v848 = vunpack.c.l.s4 1934713408
    %v849 = vunpack.c.0.s8 %v848
    %v850 = vperm.slane %v844, %v849
    %v852 = vunpack.c.l.s4 1934713408
    %v853 = vunpack.c.0.s8 %v852
    %v854 = vperm.slane %v846, %v853
    %v855 = vrot.slane %v842, 4
    %v856 = vsel %vm120, %v855, %v836
    %v857 = vrot.slane %v836, 4
    %v858 = vsel %vm120, %v842, %v857
    %v860 = vunpack.c.l.s4 1934713408
    %v861 = vunpack.c.0.s8 %v860
    %v862 = vperm.slane %v856, %v861
    %v864 = vunpack.c.l.s4 1934713408
    %v865 = vunpack.c.0.s8 %v864
    %v866 = vperm.slane %v858, %v865
    %v867 = vrot.slane %v862, 4
    %v868 = vsel %vm120, %v867, %v850
    %v869 = vrot.slane %v850, 4
    %v870 = vsel %vm120, %v862, %v869
    %v871 = vrot.slane %v866, 4
    %v872 = vsel %vm120, %v871, %v854
    %v873 = vrot.slane %v854, 4
    %v874 = vsel %vm120, %v866, %v873
    %v875 = vpack.c.bf16 %v814, %v814
    %v876 = vpack.c.bf16 %v816, %v816
    %v877 = vpack.c.bf16 %v818, %v818
    %v878 = vpack.c.bf16 %v820, %v820
    %v879 = vpack.c.bf16 %v868, %v868
    %v880 = vpack.c.bf16 %v870, %v870
    %v881 = vpack.c.bf16 %v872, %v872
    %v882 = vpack.c.bf16 %v874, %v874
    %883 = vst.msk [vmem:[#allocation10] sm:$0xf] %vm348, %v875
    %884 = vst.msk [vmem:[#allocation10 + $0x4] sm:$0xf] %vm348, %v876
    %885 = vst.msk [vmem:[#allocation10 + $0x8] sm:$0xf] %vm348, %v877
    %886 = vst.msk [vmem:[#allocation10 + $0xc] sm:$0xf] %vm348, %v878
    %887 = vst.msk [vmem:[#allocation10 + $0x10] sm:$0xf] %vm348, %v879
    %888 = vst.msk [vmem:[#allocation10 + $0x14] sm:$0xf] %vm348, %v880
    %889 = vst.msk [vmem:[#allocation10 + $0x18] sm:$0xf] %vm348, %v881
    %890 = vst.msk [vmem:[#allocation10 + $0x1c] sm:$0xf] %vm348, %v882
    // Predicated region
    $region22: #{tpu_custom_call.1} parent=1 // pred_check
      _
    $region23: #{tpu_custom_call.1} parent=1 // pred_check_branch
      %892 = sbr.rel (0) target = $region25
    $region24: #{tpu_custom_call.1} parent=1 // pred_region
      %894 = vsyncadd [#allocation4], 0
      %s895 = sshll.u32 [#allocation7], 4
      %s896 = int_to_ptr.vmem [resolvable:$true] %s895
      %s897 = sshll.u32 %s3, 4
      %s898 = int_to_ptr.hbm [resolvable:$true] %s897
      %903 = dma.vmem_to_hbm [thread:$0]  %s896, 512, %s898, [#allocation4], 64, 64, 4
    $region25: #{tpu_custom_call.1} parent=1 // pred_fallthru
      _
    // Predicated region
    $region26: #{tpu_custom_call.1} parent=1 // pred_check
      _
    $region27: #{tpu_custom_call.1} parent=1 // pred_check_branch
      %905 = sbr.rel (0) target = $region29
    $region28: #{tpu_custom_call.1} parent=1 // pred_region
      %907 = vsyncadd [#allocation9], 0
      %s908 = sshll.u32 [#allocation8], 4
      %s909 = int_to_ptr.vmem [resolvable:$true] %s908
      %s910 = sshll.u32 %s4, 4
      %s911 = int_to_ptr.hbm [resolvable:$true] %s910
      %916 = dma.vmem_to_hbm [thread:$0]  %s909, 512, %s911, [#allocation9], 64, 64, 4
    $region29: #{tpu_custom_call.1} parent=1 // pred_fallthru
      _
    // Predicated region
    $region30: #{tpu_custom_call.1} parent=1 // pred_check
      _
    $region31: #{tpu_custom_call.1} parent=1 // pred_check_branch
      %918 = sbr.rel (0) target = $region33
    $region32: #{tpu_custom_call.1} parent=1 // pred_region
      %920 = vsyncadd [#allocation9], 0
      %s921 = sshll.u32 [#allocation10], 4
      %s922 = int_to_ptr.vmem [resolvable:$true] %s921
      %s923 = sshll.u32 %s5, 4
      %s924 = int_to_ptr.hbm [resolvable:$true] %s923
      %929 = dma.vmem_to_hbm [thread:$0]  %s922, 512, %s924, [#allocation9], 64, 64, 4
    $region33: #{tpu_custom_call.1} parent=1 // pred_fallthru
      _
    // Predicated region
    $region34: #{tpu_custom_call.1} parent=1 // pred_check
      _
    $region35: #{tpu_custom_call.1} parent=1 // pred_check_branch
      %931 = sbr.rel (0) target = $region37
    $region36: #{tpu_custom_call.1} parent=1 // pred_region
      %933 = dma.done [#allocation4], 512
    $region37: #{tpu_custom_call.1} parent=1 // pred_fallthru
      _
    // Predicated region
    $region38: #{tpu_custom_call.1} parent=1 // pred_check
      _
    $region39: #{tpu_custom_call.1} parent=1 // pred_check_branch
      %935 = sbr.rel (0) target = $region41
    $region40: #{tpu_custom_call.1} parent=1 // pred_region
      %937 = dma.done [#allocation9], 512
    $region41: #{tpu_custom_call.1} parent=1 // pred_fallthru
      _
    // Predicated region
    $region42: #{tpu_custom_call.1} parent=1 // pred_check
      _
    $region43: #{tpu_custom_call.1} parent=1 // pred_check_branch
      %939 = sbr.rel (0) target = $region45
    $region44: #{tpu_custom_call.1} parent=1 // pred_region
      %941 = dma.done [#allocation9], 512
    $region45: #{tpu_custom_call.1} parent=1 // pred_fallthru
      _
    %942 = vsyncpa [#allocation3], 1
    %943 = vsyncpa [#allocation6], 1
    %944 = vsyncpa [#allocation4], 1
    %945 = vsyncpa [#allocation9], 1

</llo_original>
